<compile_context>
chip_gen: v6e
topology: v6e:2x2x1
jax: 0.10.0
libtpu: 0.0.40
codegen_flags: <defaults>
</compile_context>

<pallas_src>
import functools

import jax
import jax.numpy as jnp
from jax.experimental import pallas as pl
from jax.experimental.pallas import tpu as pltpu


def _make_nddr_kernel(num_tasks, channels):
    """Builds a kernel for a static number of tasks / channels."""
    T, C = num_tasks, channels

    def kernel(*refs):
        # refs = (x_0, ..., x_{T-1}, w, shift, out_0, ..., out_{T-1})
        x_refs = refs[:T]                       # each [C, TW]
        w_ref = refs[T]                         # [T, T, C, C] (BN scale folded)
        shift_ref = refs[T + 1]                 # [T, C, 1]
        out_refs = refs[T + 2:]                 # each [C, TW]

        # Load each task's activation tile once (reused for every output task).
        xs = [x_refs[j][...] for j in range(T)]

        for i in range(T):                      # output tasks (static unroll)
            acc = jnp.dot(w_ref[i, 0], xs[0],
                          preferred_element_type=jnp.float32)
            for j in range(1, T):               # input tasks (static unroll)
                acc = acc + jnp.dot(w_ref[i, j], xs[j],
                                    preferred_element_type=jnp.float32)
            y = acc + shift_ref[i]              # [C, TW] + [C, 1] (f32 epilogue)
            out_refs[i][...] = jnp.maximum(y, 0.0).astype(out_refs[i].dtype)

    return kernel


def make_nddr_params(tasks, channels, alpha, beta, eps=1e-5,
                     dtype=jnp.float32):
    """Deterministic parameters matching NDDRLayer.__init__ (BN scale folded).

    Returns:
      w:     [T, T, C, C]  -- w[i, j] is the (out-task i, in-task j) 1x1-conv
             block, rows pre-scaled by the BN scale of out-task i.
      shift: [T, C, 1]     -- BN shift per output channel (f32).
    """
    T, C = len(tasks), channels
    eye = jnp.eye(C, dtype=jnp.float32)
    w = jnp.zeros((T, T, C, C), jnp.float32)
    for i in range(T):
        for j in range(T):
            w = w.at[i, j].set((alpha if i == j else beta) * eye)

    # BatchNorm2d(channels): gamma=1, bias=0, running_mean=0, running_var=1.
    gamma = jnp.ones((T, C), jnp.float32)
    bias = jnp.zeros((T, C), jnp.float32)
    running_mean = jnp.zeros((T, C), jnp.float32)
    running_var = jnp.ones((T, C), jnp.float32)
    scale = gamma / jnp.sqrt(running_var + eps)            # [T, C]
    shift = bias - running_mean * scale                    # [T, C]

    w_scaled = w * scale[:, None, :, None]                 # scale out-channel rows
    return w_scaled.astype(dtype), shift[:, :, None].astype(jnp.float32)


@functools.partial(jax.jit,
                   static_argnames=("tasks", "channels", "max_tile"))
def nddr_forward(x_dict, w_packed, shift, *, tasks, channels, max_tile=2048):
    """x_dict: {task: [N, C, H, W]} (NCHW) -> {task: [N, C, H, W]} (NCHW)."""
    T, C = len(tasks), channels
    x0 = x_dict[tasks[0]]
    N, _, H, W = x0.shape
    HW = H * W

    # NCHW -> [N, C, H*W]: a pure reshape, no data movement.
    xs = [x_dict[t].reshape(N, C, HW) for t in tasks]

    # HW tile: full extent if small, else a large multiple of 128 (sweepable).
    tw = HW if HW <= max_tile else max_tile
    grid = (N, pl.cdiv(HW, tw))

    x_spec = pl.BlockSpec((None, C, tw), lambda n, p: (n, 0, p))
    in_specs = [x_spec] * T + [
        pl.BlockSpec((T, T, C, C), lambda n, p: (0, 0, 0, 0)),   # resident
        pl.BlockSpec((T, C, 1), lambda n, p: (0, 0, 0)),         # resident
    ]
    out_specs = tuple(
        pl.BlockSpec((None, C, tw), lambda n, p: (n, 0, p)) for _ in range(T))
    out_shape = tuple(
        jax.ShapeDtypeStruct((N, C, HW), x0.dtype) for _ in range(T))

    itemsize = x0.dtype.itemsize
    flops = 2 * N * HW * (T * C) * (T * C)
    bytes_accessed = (2 * T * N * C * HW * itemsize          # activations in+out
                      + w_packed.size * w_packed.dtype.itemsize
                      + shift.size * 4)

    outs = pl.pallas_call(
        _make_nddr_kernel(T, C),
        out_shape=out_shape,
        grid_spec=pltpu.PrefetchScalarGridSpec(
            num_scalar_prefetch=0,
            grid=grid,
            in_specs=in_specs,
            out_specs=out_specs,
        ),
        compiler_params=pltpu.CompilerParams(
            dimension_semantics=("parallel", "parallel"),
            vmem_limit_bytes=48 * 1024 * 1024,
        ),
        cost_estimate=pl.CostEstimate(
            flops=flops, transcendentals=0, bytes_accessed=bytes_accessed),
    )(*xs, w_packed, shift)

    # [N, C, H*W] -> NCHW, again pure reshapes.
    return {t: outs[i].reshape(N, C, H, W) for i, t in enumerate(tasks)}


def _reference(x_dict, tasks, channels, alpha, beta, eps=1e-5):
    """Independent pure-JAX reference (eval-mode BN, init stats)."""
    T, C = len(tasks), channels
    x = jnp.concatenate([x_dict[t] for t in tasks], axis=1)   # [N, T*C, H, W]
    out = {}
    scale = 1.0 / jnp.sqrt(1.0 + eps)
    for i, t in enumerate(tasks):
        w = jnp.zeros((C, T * C), jnp.float32)
        for j in range(T):
            w = w.at[:, j * C:(j + 1) * C].set(
                (alpha if j == i else beta) * jnp.eye(C, dtype=jnp.float32))
        y = jnp.einsum("ck,nkhw->nchw", w, x) * scale
        out[t] = jnp.maximum(y, 0.0)
    return out


if __name__ == "__main__":
    tasks = ("seg", "depth")
    channels = 4
    alpha, beta = 0.9, 0.1
    N, H, W = 2, 16, 16

    key = jax.random.PRNGKey(0)
    keys = jax.random.split(key, len(tasks))
    x_dict = {
        t: jax.random.normal(k, (N, channels, H, W), dtype=jnp.float32)
        for t, k in zip(tasks, keys)
    }

    w_packed, shift = make_nddr_params(tasks, channels, alpha, beta)

    out = nddr_forward(x_dict, w_packed, shift,
                       tasks=tasks, channels=channels)
    out = jax.tree_util.tree_map(jax.block_until_ready, out)

    ref = _reference(x_dict, tasks, channels, alpha, beta)
    for t in tasks:
        assert out[t].shape == (N, channels, H, W)
        assert jnp.allclose(out[t], ref[t], atol=1e-5, rtol=1e-5), t

    print("KERNEL_OK")
</pallas_src>

<mosaic_0001>
module attributes {stable_mosaic.version = 11 : i64} {
  func.func @kernel(%arg0: i32, %arg1: i32, %arg2: memref<1x4x256xf32, #tpu.memory_space<vmem>>, %arg3: memref<1x4x256xf32, #tpu.memory_space<vmem>>, %arg4: memref<2x2x4x4xf32, #tpu.memory_space<vmem>>, %arg5: memref<2x4x1xf32, #tpu.memory_space<vmem>>, %arg6: memref<1x4x256xf32, #tpu.memory_space<vmem>>, %arg7: memref<1x4x256xf32, #tpu.memory_space<vmem>>) attributes {dimension_semantics = [#tpu.dimension_semantics<parallel>, #tpu.dimension_semantics<parallel>], iteration_bounds = array<i64: 2, 1>, scalar_prefetch = 0 : i64, scratch_operands = 0 : i64, tpu.core_type = #tpu.core_type<tc>, window_params = [{transform_indices = @transform_0, window_bounds = array<i64: 1, 4, 256>}, {transform_indices = @transform_1, window_bounds = array<i64: 1, 4, 256>}, {pipeline_mode = #tpu.pipeline_mode<synchronous>, transform_indices = @transform_2, window_bounds = array<i64: 2, 2, 4, 4>}, {pipeline_mode = #tpu.pipeline_mode<synchronous>, transform_indices = @transform_3, window_bounds = array<i64: 2, 4, 1>}, {transform_indices = @transform_4, window_bounds = array<i64: 1, 4, 256>}, {transform_indices = @transform_5, window_bounds = array<i64: 1, 4, 256>}]} {
    %c0 = arith.constant 0 : index
    %c0_0 = arith.constant 0 : index
    %c0_1 = arith.constant 0 : index
    %0 = vector.load %arg2[%c0, %c0_0, %c0_1] : memref<1x4x256xf32, #tpu.memory_space<vmem>>, vector<1x4x256xf32>
    %1 = vector.shape_cast %0 : vector<1x4x256xf32> to vector<4x256xf32>
    %c0_2 = arith.constant 0 : index
    %c0_3 = arith.constant 0 : index
    %c0_4 = arith.constant 0 : index
    %2 = vector.load %arg3[%c0_2, %c0_3, %c0_4] : memref<1x4x256xf32, #tpu.memory_space<vmem>>, vector<1x4x256xf32>
    %3 = vector.shape_cast %2 : vector<1x4x256xf32> to vector<4x256xf32>
    %c0_5 = arith.constant 0 : index
    %c0_6 = arith.constant 0 : index
    %c0_7 = arith.constant 0 : index
    %c0_8 = arith.constant 0 : index
    %4 = vector.load %arg4[%c0_5, %c0_6, %c0_7, %c0_8] : memref<2x2x4x4xf32, #tpu.memory_space<vmem>>, vector<1x1x4x4xf32>
    %5 = vector.shape_cast %4 : vector<1x1x4x4xf32> to vector<4x4xf32>
    %cst = arith.constant dense<0.000000e+00> : vector<4x256xf32>
    %6 = tpu.matmul %5, %1, %cst {dimension_numbers = #tpu.dot_dimension_numbers<[1], [0], [0], [1], [0, 0, 1, 1], [], []>} : vector<4x4xf32>, vector<4x256xf32>, vector<4x256xf32> -> vector<4x256xf32>
    %c0_9 = arith.constant 0 : index
    %c1 = arith.constant 1 : index
    %c0_10 = arith.constant 0 : index
    %c0_11 = arith.constant 0 : index
    %7 = vector.load %arg4[%c0_9, %c1, %c0_10, %c0_11] : memref<2x2x4x4xf32, #tpu.memory_space<vmem>>, vector<1x1x4x4xf32>
    %8 = vector.shape_cast %7 : vector<1x1x4x4xf32> to vector<4x4xf32>
    %cst_12 = arith.constant dense<0.000000e+00> : vector<4x256xf32>
    %9 = tpu.matmul %8, %3, %cst_12 {dimension_numbers = #tpu.dot_dimension_numbers<[1], [0], [0], [1], [0, 0, 1, 1], [], []>} : vector<4x4xf32>, vector<4x256xf32>, vector<4x256xf32> -> vector<4x256xf32>
    %10 = arith.addf %6, %9 : vector<4x256xf32>
    %c0_13 = arith.constant 0 : index
    %c0_14 = arith.constant 0 : index
    %c0_15 = arith.constant 0 : index
    %11 = vector.load %arg5[%c0_13, %c0_14, %c0_15] : memref<2x4x1xf32, #tpu.memory_space<vmem>>, vector<1x4x1xf32>
    %12 = vector.shape_cast %11 : vector<1x4x1xf32> to vector<4x1xf32>
    %13 = vector.broadcast %12 : vector<4x1xf32> to vector<4x256xf32>
    %14 = arith.addf %10, %13 : vector<4x256xf32>
    %cst_16 = arith.constant 0.000000e+00 : f32
    %15 = vector.broadcast %cst_16 : f32 to vector<4x256xf32>
    %16 = arith.maximumf %14, %15 : vector<4x256xf32>
    %c0_17 = arith.constant 0 : index
    %c0_18 = arith.constant 0 : index
    %c0_19 = arith.constant 0 : index
    %17 = vector.load %arg6[%c0_17, %c0_18, %c0_19] : memref<1x4x256xf32, #tpu.memory_space<vmem>>, vector<1x4x256xf32>
    %18 = vector.shape_cast %17 : vector<1x4x256xf32> to vector<4x256xf32>
    %19 = vector.shape_cast %16 : vector<4x256xf32> to vector<1x4x256xf32>
    tpu.vector_store %arg6[%c0_17, %c0_18, %c0_19], %19 {strides = array<i32>} : memref<1x4x256xf32, #tpu.memory_space<vmem>>, vector<1x4x256xf32>,
    %c1_20 = arith.constant 1 : index
    %c0_21 = arith.constant 0 : index
    %c0_22 = arith.constant 0 : index
    %c0_23 = arith.constant 0 : index
    %20 = vector.load %arg4[%c1_20, %c0_21, %c0_22, %c0_23] : memref<2x2x4x4xf32, #tpu.memory_space<vmem>>, vector<1x1x4x4xf32>
    %21 = vector.shape_cast %20 : vector<1x1x4x4xf32> to vector<4x4xf32>
    %cst_24 = arith.constant dense<0.000000e+00> : vector<4x256xf32>
    %22 = tpu.matmul %21, %1, %cst_24 {dimension_numbers = #tpu.dot_dimension_numbers<[1], [0], [0], [1], [0, 0, 1, 1], [], []>} : vector<4x4xf32>, vector<4x256xf32>, vector<4x256xf32> -> vector<4x256xf32>
    %c1_25 = arith.constant 1 : index
    %c1_26 = arith.constant 1 : index
    %c0_27 = arith.constant 0 : index
    %c0_28 = arith.constant 0 : index
    %23 = vector.load %arg4[%c1_25, %c1_26, %c0_27, %c0_28] : memref<2x2x4x4xf32, #tpu.memory_space<vmem>>, vector<1x1x4x4xf32>
    %24 = vector.shape_cast %23 : vector<1x1x4x4xf32> to vector<4x4xf32>
    %cst_29 = arith.constant dense<0.000000e+00> : vector<4x256xf32>
    %25 = tpu.matmul %24, %3, %cst_29 {dimension_numbers = #tpu.dot_dimension_numbers<[1], [0], [0], [1], [0, 0, 1, 1], [], []>} : vector<4x4xf32>, vector<4x256xf32>, vector<4x256xf32> -> vector<4x256xf32>
    %26 = arith.addf %22, %25 : vector<4x256xf32>
    %c1_30 = arith.constant 1 : index
    %c0_31 = arith.constant 0 : index
    %c0_32 = arith.constant 0 : index
    %27 = vector.load %arg5[%c1_30, %c0_31, %c0_32] : memref<2x4x1xf32, #tpu.memory_space<vmem>>, vector<1x4x1xf32>
    %28 = vector.shape_cast %27 : vector<1x4x1xf32> to vector<4x1xf32>
    %29 = vector.broadcast %28 : vector<4x1xf32> to vector<4x256xf32>
    %30 = arith.addf %26, %29 : vector<4x256xf32>
    %cst_33 = arith.constant 0.000000e+00 : f32
    %31 = vector.broadcast %cst_33 : f32 to vector<4x256xf32>
    %32 = arith.maximumf %30, %31 : vector<4x256xf32>
    %c0_34 = arith.constant 0 : index
    %c0_35 = arith.constant 0 : index
    %c0_36 = arith.constant 0 : index
    %33 = vector.load %arg7[%c0_34, %c0_35, %c0_36] : memref<1x4x256xf32, #tpu.memory_space<vmem>>, vector<1x4x256xf32>
    %34 = vector.shape_cast %33 : vector<1x4x256xf32> to vector<4x256xf32>
    %35 = vector.shape_cast %32 : vector<4x256xf32> to vector<1x4x256xf32>
    tpu.vector_store %arg7[%c0_34, %c0_35, %c0_36], %35 {strides = array<i32>} : memref<1x4x256xf32, #tpu.memory_space<vmem>>, vector<1x4x256xf32>,
    return
  }
  func.func @transform_0(%arg0: i32, %arg1: i32) -> (i32, i32, i32) {
    %c0_i32 = arith.constant 0 : i32
    %c0_i32_0 = arith.constant 0 : i32
    return %arg0, %c0_i32, %arg1 : i32, i32, i32
  }
  func.func @transform_1(%arg0: i32, %arg1: i32) -> (i32, i32, i32) {
    %c0_i32 = arith.constant 0 : i32
    %c0_i32_0 = arith.constant 0 : i32
    return %arg0, %c0_i32, %arg1 : i32, i32, i32
  }
  func.func @transform_2(%arg0: i32, %arg1: i32) -> (i32, i32, i32, i32) {
    %c0_i32 = arith.constant 0 : i32
    %c0_i32_0 = arith.constant 0 : i32
    %c0_i32_1 = arith.constant 0 : i32
    %c0_i32_2 = arith.constant 0 : i32
    %c0_i32_3 = arith.constant 0 : i32
    return %c0_i32, %c0_i32_0, %c0_i32_1, %c0_i32_2 : i32, i32, i32, i32
  }
  func.func @transform_3(%arg0: i32, %arg1: i32) -> (i32, i32, i32) {
    %c0_i32 = arith.constant 0 : i32
    %c0_i32_0 = arith.constant 0 : i32
    %c0_i32_1 = arith.constant 0 : i32
    %c0_i32_2 = arith.constant 0 : i32
    return %c0_i32, %c0_i32_0, %c0_i32_1 : i32, i32, i32
  }
  func.func @transform_4(%arg0: i32, %arg1: i32) -> (i32, i32, i32) {
    %c0_i32 = arith.constant 0 : i32
    %c0_i32_0 = arith.constant 0 : i32
    return %arg0, %c0_i32, %arg1 : i32, i32, i32
  }
  func.func @transform_5(%arg0: i32, %arg1: i32) -> (i32, i32, i32) {
    %c0_i32 = arith.constant 0 : i32
    %c0_i32_0 = arith.constant 0 : i32
    return %arg0, %c0_i32, %arg1 : i32, i32, i32
  }
}

</mosaic_0001>

<llo_original>
// kernel: nddr_forward.1
$region0: #{nddr_forward.1}
  #allocation0 [shape = 'u32[]', space=smem, size = 0x4, offset = 0x4, fixed_abs, tag = 'smem constant byte address 0x4 - core index']
  #allocation1 [shape = 'u32[144,128]{1,0:T(1,128)}', space=vmem, size = 0x12000, scoped, tag = 'internal scratch']
  %s0 = inlined_call_operand.vmem [shape: f32[2,4,256], index: 0, kind: input, shape index: {}]
  %s1 = inlined_call_operand.vmem [shape: f32[2,4,256], index: 1, kind: input, shape index: {}]
  %s2 = inlined_call_operand.vmem [shape: f32[2,2,4,4], index: 2, kind: input, shape index: {}]
  %s3 = inlined_call_operand.vmem [shape: f32[2,4,1], index: 3, kind: input, shape index: {}]
  %s4 = inlined_call_operand.vmem [shape: f32[2,4,256], index: 4, kind: output, shape index: {0}]
  %s5 = inlined_call_operand.vmem [shape: f32[2,4,256], index: 5, kind: output, shape index: {1}]
  %6 = xla_tuple %s4, %s5
  %s7 = sld [smem:[#allocation0]]
  $region57: #{nddr_forward.1} parent=0
    _
  %s9 = ssub.s32 1, %s7
  %s10 = scalar_select 0, %s9, %s7
  loop: start=0, step=1, limit=4
  $region2: #{nddr_forward.1} parent=0 // loop_pre_header
    _
  $region3: #{nddr_forward.1} parent=0 // loop_header
    %s12 = sphi 0, %s16
    %p13 = scmp.ge.s32.totalorder %s12, 4
    %s19 = sphi 0, %s31
    %s20 = sphi 0, %s27
    %s21 = sphi 0, %s19
    %s22 = sphi 0, %s20
    %s23 = sphi 0, %s21
    %s24 = sphi 0, %s22
    %s36 = sphi 0, %s38
    %s39 = sphi 0, %s36
    %s40 = sphi 0, %s39
    %s56 = sphi 0, %s40
    %s64 = sphi 0, %s66
    %s67 = sphi 0, %s64
    %s68 = sphi 0, %s67
    %s84 = sphi 0, %s68
    %s88 = sphi 0, %s88
    %s90 = sphi 0, %s88
    %s91 = sphi 0, %s90
    %s105 = sphi 0, %s91
    %s109 = sphi 0, %s109
    %s111 = sphi 0, %s109
    %s112 = sphi 0, %s111
    %s126 = sphi 0, %s112
    %s134 = sphi 0, %s136
    %s137 = sphi 0, %s134
    %s138 = sphi 0, %s137
    %s154 = sphi 0, %s138
    %s162 = sphi 0, %s164
    %s165 = sphi 0, %s162
    %s166 = sphi 0, %s165
    %s182 = sphi 0, %s166
  $region4: #{nddr_forward.1} parent=0 // loop_header_branch
    %15 = sbr.rel (%p13) target = $region8
  $region5: #{nddr_forward.1} parent=0 // loop_body
    %s17 = ssub.s32 %s12, 1
    %s18 = ssub.s32 %s12, 2
    %s25 = sadd.s32 1, %s20
    %p26 = scmp.ge.s32.totalorder %s25, 1
    %s27 = scalar_select %p26, 0, %s25
    %s28 = sadd.s32 1, %s19
    %s29 = scalar_select %p26, %s28, %s19
    %p30 = scmp.ge.s32.totalorder %s29, 2
    %s31 = scalar_select %p30, 0, %s29
    %s32 = ssub.s32 %s19, %s31
    %s33 = ssub.s32 %s20, %s27
    %s34 = sor.u32 %s32, %s33
    %p35 = scmp.eq.s32.totalorder %s34, 0
    %s37 = sadd.s32 %s36, 1
    %s38 = scalar_select %p35, %s36, %s37
    %p41 = pneg %p35
    %p42 = scmp.eq.s32.totalorder %s12, 1
    %p43 = por %p41, %p42
    %p44 = scmp.ne.s32.totalorder %s36, %s39
    %p45 = scmp.eq.s32.totalorder %s12, 0
    %p46 = por %p44, %p45
    %p47 = scmp.ne.s32.totalorder %s36, %s39
    %p48 = scmp.eq.s32.totalorder %s17, 1
    %p49 = por %p47, %p48
    %p50 = scmp.ne.s32.totalorder %s39, %s40
    %p51 = scmp.eq.s32.totalorder %s17, 0
    %p52 = por %p50, %p51
    %p53 = scmp.ne.s32.totalorder %s39, %s40
    %p54 = scmp.eq.s32.totalorder %s18, 1
    %p55 = por %p53, %p54
    %p57 = scmp.ne.s32.totalorder %s40, %s56
    %p58 = scmp.eq.s32.totalorder %s18, 0
    %p59 = por %p57, %p58
    %s60 = ssub.s32 %s19, %s31
    %s61 = ssub.s32 %s20, %s27
    %s62 = sor.u32 %s60, %s61
    %p63 = scmp.eq.s32.totalorder %s62, 0
    %s65 = sadd.s32 %s64, 1
    %s66 = scalar_select %p63, %s64, %s65
    %p69 = pneg %p63
    %p70 = scmp.eq.s32.totalorder %s12, 1
    %p71 = por %p69, %p70
    %p72 = scmp.ne.s32.totalorder %s64, %s67
    %p73 = scmp.eq.s32.totalorder %s12, 0
    %p74 = por %p72, %p73
    %p75 = scmp.ne.s32.totalorder %s64, %s67
    %p76 = scmp.eq.s32.totalorder %s17, 1
    %p77 = por %p75, %p76
    %p78 = scmp.ne.s32.totalorder %s67, %s68
    %p79 = scmp.eq.s32.totalorder %s17, 0
    %p80 = por %p78, %p79
    %p81 = scmp.ne.s32.totalorder %s67, %s68
    %p82 = scmp.eq.s32.totalorder %s18, 1
    %p83 = por %p81, %p82
    %p85 = scmp.ne.s32.totalorder %s68, %s84
    %p86 = scmp.eq.s32.totalorder %s18, 0
    %p87 = por %p85, %p86
    %s89 = sadd.s32 %s88, 1
    %p92 = scmp.eq.s32.totalorder %s12, 1
    %p93 = scmp.ne.s32.totalorder %s88, %s90
    %p94 = scmp.eq.s32.totalorder %s12, 0
    %p95 = por %p93, %p94
    %p96 = scmp.ne.s32.totalorder %s88, %s90
    %p97 = scmp.eq.s32.totalorder %s17, 1
    %p98 = por %p96, %p97
    %p99 = scmp.ne.s32.totalorder %s90, %s91
    %p100 = scmp.eq.s32.totalorder %s17, 0
    %p101 = por %p99, %p100
    %p102 = scmp.ne.s32.totalorder %s90, %s91
    %p103 = scmp.eq.s32.totalorder %s18, 1
    %p104 = por %p102, %p103
    %p106 = scmp.ne.s32.totalorder %s91, %s105
    %p107 = scmp.eq.s32.totalorder %s18, 0
    %p108 = por %p106, %p107
    %s110 = sadd.s32 %s109, 1
    %p113 = scmp.eq.s32.totalorder %s12, 1
    %p114 = scmp.ne.s32.totalorder %s109, %s111
    %p115 = scmp.eq.s32.totalorder %s12, 0
    %p116 = por %p114, %p115
    %p117 = scmp.ne.s32.totalorder %s109, %s111
    %p118 = scmp.eq.s32.totalorder %s17, 1
    %p119 = por %p117, %p118
    %p120 = scmp.ne.s32.totalorder %s111, %s112
    %p121 = scmp.eq.s32.totalorder %s17, 0
    %p122 = por %p120, %p121
    %p123 = scmp.ne.s32.totalorder %s111, %s112
    %p124 = scmp.eq.s32.totalorder %s18, 1
    %p125 = por %p123, %p124
    %p127 = scmp.ne.s32.totalorder %s112, %s126
    %p128 = scmp.eq.s32.totalorder %s18, 0
    %p129 = por %p127, %p128
    %s130 = ssub.s32 %s19, %s31
    %s131 = ssub.s32 %s20, %s27
    %s132 = sor.u32 %s130, %s131
    %p133 = scmp.eq.s32.totalorder %s132, 0
    %s135 = sadd.s32 %s134, 1
    %s136 = scalar_select %p133, %s134, %s135
    %p139 = pneg %p133
    %p140 = scmp.eq.s32.totalorder %s12, 1
    %p141 = por %p139, %p140
    %p142 = scmp.ne.s32.totalorder %s134, %s137
    %p143 = scmp.eq.s32.totalorder %s12, 0
    %p144 = por %p142, %p143
    %p145 = scmp.ne.s32.totalorder %s134, %s137
    %p146 = scmp.eq.s32.totalorder %s17, 1
    %p147 = por %p145, %p146
    %p148 = scmp.ne.s32.totalorder %s137, %s138
    %p149 = scmp.eq.s32.totalorder %s17, 0
    %p150 = por %p148, %p149
    %p151 = scmp.ne.s32.totalorder %s137, %s138
    %p152 = scmp.eq.s32.totalorder %s18, 1
    %p153 = por %p151, %p152
    %p155 = scmp.ne.s32.totalorder %s138, %s154
    %p156 = scmp.eq.s32.totalorder %s18, 0
    %p157 = por %p155, %p156
    %s158 = ssub.s32 %s19, %s31
    %s159 = ssub.s32 %s20, %s27
    %s160 = sor.u32 %s158, %s159
    %p161 = scmp.eq.s32.totalorder %s160, 0
    %s163 = sadd.s32 %s162, 1
    %s164 = scalar_select %p161, %s162, %s163
    %p167 = pneg %p161
    %p168 = scmp.eq.s32.totalorder %s12, 1
    %p169 = por %p167, %p168
    %p170 = scmp.ne.s32.totalorder %s162, %s165
    %p171 = scmp.eq.s32.totalorder %s12, 0
    %p172 = por %p170, %p171
    %p173 = scmp.ne.s32.totalorder %s162, %s165
    %p174 = scmp.eq.s32.totalorder %s17, 1
    %p175 = por %p173, %p174
    %p176 = scmp.ne.s32.totalorder %s165, %s166
    %p177 = scmp.eq.s32.totalorder %s17, 0
    %p178 = por %p176, %p177
    %p179 = scmp.ne.s32.totalorder %s165, %s166
    %p180 = scmp.eq.s32.totalorder %s18, 1
    %p181 = por %p179, %p180
    %p183 = scmp.ne.s32.totalorder %s166, %s182
    %p184 = scmp.eq.s32.totalorder %s18, 0
    %p185 = por %p183, %p184
    %p186 = scmp.le.s32.totalorder 1, %s12
    %p187 = scmp.lt.s32.totalorder %s12, 3
    %p188 = pnand %p186, %p187
    %p189 = pneg %p188
    // Predicated region
    $region9: #{nddr_forward.1} parent=5 // pred_check
      _
    $region10: #{nddr_forward.1} parent=5 // pred_check_branch
      %191 = sbr.rel (%p188) target = $region12
    $region11: #{nddr_forward.1} parent=5 // pred_region
      %s192 = ssub.s32 %s12, 1
      // Predicated region
      $region13: #{nddr_forward.1} parent=11 // pred_check
        %p193 = pneg %p101
      $region14: #{nddr_forward.1} parent=11 // pred_check_branch
        %195 = sbr.rel (%p193) target = $region16
      $region15: #{nddr_forward.1} parent=11 // pred_region
        _
      $region16: #{nddr_forward.1} parent=11 // pred_fallthru
        _
      // Predicated region
      $region17: #{nddr_forward.1} parent=11 // pred_check
        %p196 = pneg %p122
      $region18: #{nddr_forward.1} parent=11 // pred_check_branch
        %198 = sbr.rel (%p196) target = $region20
      $region19: #{nddr_forward.1} parent=11 // pred_region
        _
      $region20: #{nddr_forward.1} parent=11 // pred_fallthru
        _
    $region12: #{nddr_forward.1} parent=5 // pred_fallthru
      _
    %p199 = scmp.lt.s32.totalorder %s12, 2
    // Predicated region
    $region21: #{nddr_forward.1} parent=5 // pred_check
      %p200 = pneg %p199
    $region22: #{nddr_forward.1} parent=5 // pred_check_branch
      %202 = sbr.rel (%p200) target = $region24
    $region23: #{nddr_forward.1} parent=5 // pred_region
      // Predicated region
      $region25: #{nddr_forward.1} parent=23 // pred_check
        %p203 = pneg %p46
      $region26: #{nddr_forward.1} parent=23 // pred_check_branch
        %205 = sbr.rel (%p203) target = $region28
      $region27: #{nddr_forward.1} parent=23 // pred_region
        %s206 = smul.u32 2, %s20
        %p207 = scmp.lt.s32.totalorder %s19, 1
        %s208 = scalar_select %p207, %s19, 1
        %p209 = scmp.lt.s32.totalorder %s206, 1
        %s210 = scalar_select %p209, %s206, 1
        %s211 = smul.addr %s208, 2
        %s212 = sadd.s32 %s210, %s211
        %s213 = smul.addr %s212, 4
        %s214 = scalar_lea.vmem %s0, %s213
        %s215 = smul.u32 2, %s20
      $region28: #{nddr_forward.1} parent=23 // pred_fallthru
        _
      // Predicated region
      $region29: #{nddr_forward.1} parent=23 // pred_check
        %p216 = pneg %p74
      $region30: #{nddr_forward.1} parent=23 // pred_check_branch
        %218 = sbr.rel (%p216) target = $region32
      $region31: #{nddr_forward.1} parent=23 // pred_region
        %s219 = smul.u32 2, %s20
        %p220 = scmp.lt.s32.totalorder %s19, 1
        %s221 = scalar_select %p220, %s19, 1
        %p222 = scmp.lt.s32.totalorder %s219, 1
        %s223 = scalar_select %p222, %s219, 1
        %s224 = smul.addr %s221, 2
        %s225 = sadd.s32 %s223, %s224
        %s226 = smul.addr %s225, 4
        %s227 = scalar_lea.vmem %s1, %s226
        %s228 = smul.u32 2, %s20
      $region32: #{nddr_forward.1} parent=23 // pred_fallthru
        _
    $region24: #{nddr_forward.1} parent=5 // pred_fallthru
      _
    %p229 = scmp.le.s32.totalorder 1, %s12
    %p230 = scmp.lt.s32.totalorder %s12, 3
    %p231 = pnand %p229, %p230
    %p232 = pneg %p231
    // Predicated region
    $region33: #{nddr_forward.1} parent=5 // pred_check
      _
    $region34: #{nddr_forward.1} parent=5 // pred_check_branch
      %234 = sbr.rel (%p231) target = $region36
    $region35: #{nddr_forward.1} parent=5 // pred_region
      %s235 = ssub.s32 %s12, 1
      %s236 = smul.u32 2, %s22
      %p237 = scmp.lt.s32.totalorder %s21, 1
      %s238 = scalar_select %p237, %s21, 1
      %p239 = scmp.lt.s32.totalorder %s236, 1
      %s240 = scalar_select %p239, %s236, 1
      %s241 = smul.addr %s238, 2
      %s242 = sadd.s32 %s240, %s241
      %s243 = smul.addr %s242, 4
      %s244 = scalar_lea.vmem %s0, %s243
      %p245 = pneg %p52
      %p246 = pneg %p49
      %s247 = smul.u32 2, %s22
      %p248 = scmp.lt.s32.totalorder %s21, 1
      %s249 = scalar_select %p248, %s21, 1
      %p250 = scmp.lt.s32.totalorder %s247, 1
      %s251 = scalar_select %p250, %s247, 1
      %s252 = smul.addr %s249, 2
      %s253 = sadd.s32 %s251, %s252
      %s254 = smul.addr %s253, 4
      %s255 = scalar_lea.vmem %s1, %s254
      %p256 = pneg %p80
      %p257 = pneg %p77
      %p258 = pneg %p101
      %p259 = pneg %p98
      %p260 = pneg %p122
      %p261 = pneg %p119
      %p262 = pneg %p150
      %p263 = pneg %p147
      %s264 = smul.u32 2, %s22
      %p265 = scmp.lt.s32.totalorder %s21, 1
      %s266 = scalar_select %p265, %s21, 1
      %p267 = scmp.lt.s32.totalorder %s264, 1
      %s268 = scalar_select %p267, %s264, 1
      %s269 = smul.addr %s266, 2
      %s270 = sadd.s32 %s268, %s269
      %s271 = smul.addr %s270, 4
      %s272 = scalar_lea.vmem %s4, %s271
      %p273 = pneg %p178
      %p274 = pneg %p175
      %s275 = smul.u32 2, %s22
      %p276 = scmp.lt.s32.totalorder %s21, 1
      %s277 = scalar_select %p276, %s21, 1
      %p278 = scmp.lt.s32.totalorder %s275, 1
      %s279 = scalar_select %p278, %s275, 1
      %s280 = smul.addr %s277, 2
      %s281 = sadd.s32 %s279, %s280
      %s282 = smul.addr %s281, 4
      %s283 = scalar_lea.vmem %s5, %s282
      %s284 = smul.u32 2, %s22
      %p285 = scmp.lt.s32.totalorder %s21, 1
      %s286 = scalar_select %p285, %s21, 1
      %p287 = scmp.lt.s32.totalorder %s284, 1
      %s288 = scalar_select %p287, %s284, 1
      %s289 = smul.addr %s286, 2
      %s290 = sadd.s32 %s288, %s289
      %s291 = smul.addr %s290, 4
      %s292 = scalar_lea.vmem %s0, %s291
      %s293 = smul.u32 2, %s22
      %s294 = smul.u32 2, %s22
      %p295 = scmp.lt.s32.totalorder %s21, 1
      %s296 = scalar_select %p295, %s21, 1
      %p297 = scmp.lt.s32.totalorder %s294, 1
      %s298 = scalar_select %p297, %s294, 1
      %s299 = smul.addr %s296, 2
      %s300 = sadd.s32 %s298, %s299
      %s301 = smul.addr %s300, 4
      %s302 = scalar_lea.vmem %s1, %s301
      %s303 = smul.u32 2, %s22
      %s304 = smul.u32 2, %s22
      %p305 = scmp.lt.s32.totalorder %s21, 1
      %s306 = scalar_select %p305, %s21, 1
      %p307 = scmp.lt.s32.totalorder %s304, 1
      %s308 = scalar_select %p307, %s304, 1
      %s309 = smul.addr %s306, 2
      %s310 = sadd.s32 %s308, %s309
      %s311 = smul.addr %s310, 4
      %s312 = scalar_lea.vmem %s4, %s311
      %s313 = smul.u32 2, %s22
      %s314 = smul.u32 2, %s22
      %p315 = scmp.lt.s32.totalorder %s21, 1
      %s316 = scalar_select %p315, %s21, 1
      %p317 = scmp.lt.s32.totalorder %s314, 1
      %s318 = scalar_select %p317, %s314, 1
      %s319 = smul.addr %s316, 2
      %s320 = sadd.s32 %s318, %s319
      %s321 = smul.addr %s320, 4
      %s322 = scalar_lea.vmem %s5, %s321
      %s323 = smul.u32 2, %s22
      %v324 = vld [vmem:[%s292] sm:$0xff]
      %v325 = vld [vmem:[%s302] sm:$0xff]
      %v326 = vld [vmem:[%s2] sm:$0xf]
      %s327 = scalar_lea.vmem %s2, 4
      %v328 = vld [vmem:[%s327] sm:$0xf]
      %v330 = vcombine.high %v325, %v325
      %vm331 = vcmask 31744
      %v333 = vsel %vm331, %v328, 0
      %vm335 = vcmask 1043456
      %v336 = vsel %vm335, %v325, 0
      %v338 = vsel %vm335, %v330, 0
      %340 = vmatprep.subr.mxu0 0.0
      %341 = vmatpush1.msra.mxu0 0.0
      %342 = vmatprep.subr.mxu0 0.0
      %343 = vmatpush1.msra.mxu0 0.0
      %344 = vmatprep.subr.mxu0 0.0
      %345 = vmatpush1.msra.mxu0 0.0
      %346 = vmatprep.subr.mxu0 0.0
      %347 = vmatpush1.msra.mxu0 0.0
      %348 = vmatprep.subr.mxu0 0.0
      %349 = vmatpush1.msra.mxu0 0.0
      %350 = vmatprep.subr.mxu0 0.0
      %351 = vmatpush1.msra.mxu0 0.0
      %352 = vmatprep.subr.mxu0 0.0
      %353 = vmatpush1.msra.mxu0 0.0
      %354 = vmatprep.subr.mxu0 0.0
      %355 = vmatpush1.msra.mxu0 0.0
      %356 = vmatprep.subr.mxu0 0.0
      %357 = vmatpush1.msra.mxu0 0.0
      %358 = vmatprep.subr.mxu0 0.0
      %359 = vmatpush1.msra.mxu0 0.0
      %360 = vmatprep.subr.mxu0 0.0
      %361 = vmatpush1.msra.mxu0 0.0
      %362 = vmatprep.subr.mxu0 0.0
      %363 = vmatpush1.msra.mxu0 0.0
      %364 = vmatprep.subr.mxu0 0.0
      %365 = vmatpush1.msra.mxu0 0.0
      %366 = vmatprep.subr.mxu0 0.0
      %367 = vmatpush1.msra.mxu0 0.0
      %368 = vmatprep.subr.mxu0 0.0
      %369 = vmatpush1.msra.mxu0 0.0
      %370 = vmatprep.subr.mxu0 %v338
      %371 = vmatpush1.msra.mxu0 %v336
      %372 = vmatprep.subr.mxu0 0.0
      %373 = vmatpush2.msra.mxu0 0.0
      %374 = vmatprep.subr.mxu0 0.0
      %375 = vmatpush2.msra.mxu0 0.0
      %376 = vmatprep.subr.mxu0 0.0
      %377 = vmatpush2.msra.mxu0 0.0
      %378 = vmatprep.subr.mxu0 0.0
      %379 = vmatpush2.msra.mxu0 0.0
      %380 = vmatprep.subr.mxu0 0.0
      %381 = vmatpush2.msra.mxu0 0.0
      %382 = vmatprep.subr.mxu0 0.0
      %383 = vmatpush2.msra.mxu0 0.0
      %384 = vmatprep.subr.mxu0 0.0
      %385 = vmatpush2.msra.mxu0 0.0
      %386 = vmatprep.subr.mxu0 0.0
      %387 = vmatpush2.msra.mxu0 0.0
      %388 = vmatprep.subr.mxu0 0.0
      %389 = vmatpush2.msra.mxu0 0.0
      %390 = vmatprep.subr.mxu0 0.0
      %391 = vmatpush2.msra.mxu0 0.0
      %392 = vmatprep.subr.mxu0 0.0
      %393 = vmatpush2.msra.mxu0 0.0
      %394 = vmatprep.subr.mxu0 0.0
      %395 = vmatpush2.msra.mxu0 0.0
      %396 = vmatprep.subr.mxu0 0.0
      %397 = vmatpush2.msra.mxu0 0.0
      %398 = vmatprep.subr.mxu0 0.0
      %399 = vmatpush2.msra.mxu0 0.0
      %400 = vmatprep.subr.mxu0 0.0
      %401 = vmatpush2.msra.mxu0 0.0
      %402 = vmatprep.subr.mxu0 0.0
      %403 = vmatpush2.msra.mxu0 0.0
      %404 = vmatprep.mubr.f32.mxu0 0.0
      %405 = vmatmul.mubr.f32.gmra.mxu0 %v333
      %v406 = vpop.f32.mrf.mxu0
      %v407 = vadd.f32 0.0, %v406
      %v408 = vpop.f32.mrf.mxu0
      %v409 = vadd.f32 0.0, %v408
      %410 = vdwg.mxu0
      %v412 = vcombine.high %v324, %v324
      %v414 = vsel %vm331, %v326, 0
      %v416 = vsel %vm335, %v324, 0
      %v418 = vsel %vm335, %v412, 0
      %420 = vmatprep.subr.mxu0 0.0
      %421 = vmatpush1.msra.mxu0 0.0
      %422 = vmatprep.subr.mxu0 0.0
      %423 = vmatpush1.msra.mxu0 0.0
      %424 = vmatprep.subr.mxu0 0.0
      %425 = vmatpush1.msra.mxu0 0.0
      %426 = vmatprep.subr.mxu0 0.0
      %427 = vmatpush1.msra.mxu0 0.0
      %428 = vmatprep.subr.mxu0 0.0
      %429 = vmatpush1.msra.mxu0 0.0
      %430 = vmatprep.subr.mxu0 0.0
      %431 = vmatpush1.msra.mxu0 0.0
      %432 = vmatprep.subr.mxu0 0.0
      %433 = vmatpush1.msra.mxu0 0.0
      %434 = vmatprep.subr.mxu0 0.0
      %435 = vmatpush1.msra.mxu0 0.0
      %436 = vmatprep.subr.mxu0 0.0
      %437 = vmatpush1.msra.mxu0 0.0
      %438 = vmatprep.subr.mxu0 0.0
      %439 = vmatpush1.msra.mxu0 0.0
      %440 = vmatprep.subr.mxu0 0.0
      %441 = vmatpush1.msra.mxu0 0.0
      %442 = vmatprep.subr.mxu0 0.0
      %443 = vmatpush1.msra.mxu0 0.0
      %444 = vmatprep.subr.mxu0 0.0
      %445 = vmatpush1.msra.mxu0 0.0
      %446 = vmatprep.subr.mxu0 0.0
      %447 = vmatpush1.msra.mxu0 0.0
      %448 = vmatprep.subr.mxu0 0.0
      %449 = vmatpush1.msra.mxu0 0.0
      %450 = vmatprep.subr.mxu0 %v418
      %451 = vmatpush1.msra.mxu0 %v416
      %452 = vmatprep.subr.mxu0 0.0
      %453 = vmatpush2.msra.mxu0 0.0
      %454 = vmatprep.subr.mxu0 0.0
      %455 = vmatpush2.msra.mxu0 0.0
      %456 = vmatprep.subr.mxu0 0.0
      %457 = vmatpush2.msra.mxu0 0.0
      %458 = vmatprep.subr.mxu0 0.0
      %459 = vmatpush2.msra.mxu0 0.0
      %460 = vmatprep.subr.mxu0 0.0
      %461 = vmatpush2.msra.mxu0 0.0
      %462 = vmatprep.subr.mxu0 0.0
      %463 = vmatpush2.msra.mxu0 0.0
      %464 = vmatprep.subr.mxu0 0.0
      %465 = vmatpush2.msra.mxu0 0.0
      %466 = vmatprep.subr.mxu0 0.0
      %467 = vmatpush2.msra.mxu0 0.0
      %468 = vmatprep.subr.mxu0 0.0
      %469 = vmatpush2.msra.mxu0 0.0
      %470 = vmatprep.subr.mxu0 0.0
      %471 = vmatpush2.msra.mxu0 0.0
      %472 = vmatprep.subr.mxu0 0.0
      %473 = vmatpush2.msra.mxu0 0.0
      %474 = vmatprep.subr.mxu0 0.0
      %475 = vmatpush2.msra.mxu0 0.0
      %476 = vmatprep.subr.mxu0 0.0
      %477 = vmatpush2.msra.mxu0 0.0
      %478 = vmatprep.subr.mxu0 0.0
      %479 = vmatpush2.msra.mxu0 0.0
      %480 = vmatprep.subr.mxu0 0.0
      %481 = vmatpush2.msra.mxu0 0.0
      %482 = vmatprep.subr.mxu0 0.0
      %483 = vmatpush2.msra.mxu0 0.0
      %484 = vmatprep.mubr.f32.mxu0 0.0
      %485 = vmatmul.mubr.f32.gmra.mxu0 %v414
      %v486 = vpop.f32.mrf.mxu0
      %v487 = vadd.f32 %v407, %v486
      %v488 = vpop.f32.mrf.mxu0
      %v489 = vadd.f32 %v409, %v488
      %490 = vdwg.mxu0
      %v491 = vld [vmem:[%s3] sm:$0xf]
      %493 = vset.pattern.permute.xlu0 0
      %494 = vperm.xlu0 %493, %v491
      %v495 = vpop.permute.xlu0 %494
      %v497 = vadd.f32 %v487, %v495
      %v498 = vadd.f32 %v489, %v495
      %v499 = vmax.f32 %v497, 0.0
      %v500 = vmax.f32 %v498, 0.0
      %v503 = vcombine.low %v499, %v500
      %505 = vst [vmem:[%s312] sm:$0xff] %v503
      %s506 = scalar_lea.vmem %s2, 8
      %v507 = vld [vmem:[%s506] sm:$0xf]
      %s508 = scalar_lea.vmem %s2, 12
      %v509 = vld [vmem:[%s508] sm:$0xf]
      %v511 = vsel %vm331, %v509, 0
      %513 = vmatprep.subr.mxu0 0.0
      %514 = vmatpush1.msra.mxu0 0.0
      %515 = vmatprep.subr.mxu0 0.0
      %516 = vmatpush1.msra.mxu0 0.0
      %517 = vmatprep.subr.mxu0 0.0
      %518 = vmatpush1.msra.mxu0 0.0
      %519 = vmatprep.subr.mxu0 0.0
      %520 = vmatpush1.msra.mxu0 0.0
      %521 = vmatprep.subr.mxu0 0.0
      %522 = vmatpush1.msra.mxu0 0.0
      %523 = vmatprep.subr.mxu0 0.0
      %524 = vmatpush1.msra.mxu0 0.0
      %525 = vmatprep.subr.mxu0 0.0
      %526 = vmatpush1.msra.mxu0 0.0
      %527 = vmatprep.subr.mxu0 0.0
      %528 = vmatpush1.msra.mxu0 0.0
      %529 = vmatprep.subr.mxu0 0.0
      %530 = vmatpush1.msra.mxu0 0.0
      %531 = vmatprep.subr.mxu0 0.0
      %532 = vmatpush1.msra.mxu0 0.0
      %533 = vmatprep.subr.mxu0 0.0
      %534 = vmatpush1.msra.mxu0 0.0
      %535 = vmatprep.subr.mxu0 0.0
      %536 = vmatpush1.msra.mxu0 0.0
      %537 = vmatprep.subr.mxu0 0.0
      %538 = vmatpush1.msra.mxu0 0.0
      %539 = vmatprep.subr.mxu0 0.0
      %540 = vmatpush1.msra.mxu0 0.0
      %541 = vmatprep.subr.mxu0 0.0
      %542 = vmatpush1.msra.mxu0 0.0
      %543 = vmatprep.subr.mxu0 %v338
      %544 = vmatpush1.msra.mxu0 %v336
      %545 = vmatprep.subr.mxu0 0.0
      %546 = vmatpush2.msra.mxu0 0.0
      %547 = vmatprep.subr.mxu0 0.0
      %548 = vmatpush2.msra.mxu0 0.0
      %549 = vmatprep.subr.mxu0 0.0
      %550 = vmatpush2.msra.mxu0 0.0
      %551 = vmatprep.subr.mxu0 0.0
      %552 = vmatpush2.msra.mxu0 0.0
      %553 = vmatprep.subr.mxu0 0.0
      %554 = vmatpush2.msra.mxu0 0.0
      %555 = vmatprep.subr.mxu0 0.0
      %556 = vmatpush2.msra.mxu0 0.0
      %557 = vmatprep.subr.mxu0 0.0
      %558 = vmatpush2.msra.mxu0 0.0
      %559 = vmatprep.subr.mxu0 0.0
      %560 = vmatpush2.msra.mxu0 0.0
      %561 = vmatprep.subr.mxu0 0.0
      %562 = vmatpush2.msra.mxu0 0.0
      %563 = vmatprep.subr.mxu0 0.0
      %564 = vmatpush2.msra.mxu0 0.0
      %565 = vmatprep.subr.mxu0 0.0
      %566 = vmatpush2.msra.mxu0 0.0
      %567 = vmatprep.subr.mxu0 0.0
      %568 = vmatpush2.msra.mxu0 0.0
      %569 = vmatprep.subr.mxu0 0.0
      %570 = vmatpush2.msra.mxu0 0.0
      %571 = vmatprep.subr.mxu0 0.0
      %572 = vmatpush2.msra.mxu0 0.0
      %573 = vmatprep.subr.mxu0 0.0
      %574 = vmatpush2.msra.mxu0 0.0
      %575 = vmatprep.subr.mxu0 0.0
      %576 = vmatpush2.msra.mxu0 0.0
      %577 = vmatprep.mubr.f32.mxu0 0.0
      %578 = vmatmul.mubr.f32.gmra.mxu0 %v511
      %v579 = vpop.f32.mrf.mxu0
      %v580 = vadd.f32 0.0, %v579
      %v581 = vpop.f32.mrf.mxu0
      %v582 = vadd.f32 0.0, %v581
      %583 = vdwg.mxu0
      %v585 = vsel %vm331, %v507, 0
      %587 = vmatprep.subr.mxu0 0.0
      %588 = vmatpush1.msra.mxu0 0.0
      %589 = vmatprep.subr.mxu0 0.0
      %590 = vmatpush1.msra.mxu0 0.0
      %591 = vmatprep.subr.mxu0 0.0
      %592 = vmatpush1.msra.mxu0 0.0
      %593 = vmatprep.subr.mxu0 0.0
      %594 = vmatpush1.msra.mxu0 0.0
      %595 = vmatprep.subr.mxu0 0.0
      %596 = vmatpush1.msra.mxu0 0.0
      %597 = vmatprep.subr.mxu0 0.0
      %598 = vmatpush1.msra.mxu0 0.0
      %599 = vmatprep.subr.mxu0 0.0
      %600 = vmatpush1.msra.mxu0 0.0
      %601 = vmatprep.subr.mxu0 0.0
      %602 = vmatpush1.msra.mxu0 0.0
      %603 = vmatprep.subr.mxu0 0.0
      %604 = vmatpush1.msra.mxu0 0.0
      %605 = vmatprep.subr.mxu0 0.0
      %606 = vmatpush1.msra.mxu0 0.0
      %607 = vmatprep.subr.mxu0 0.0
      %608 = vmatpush1.msra.mxu0 0.0
      %609 = vmatprep.subr.mxu0 0.0
      %610 = vmatpush1.msra.mxu0 0.0
      %611 = vmatprep.subr.mxu0 0.0
      %612 = vmatpush1.msra.mxu0 0.0
      %613 = vmatprep.subr.mxu0 0.0
      %614 = vmatpush1.msra.mxu0 0.0
      %615 = vmatprep.subr.mxu0 0.0
      %616 = vmatpush1.msra.mxu0 0.0
      %617 = vmatprep.subr.mxu0 %v418
      %618 = vmatpush1.msra.mxu0 %v416
      %619 = vmatprep.subr.mxu0 0.0
      %620 = vmatpush2.msra.mxu0 0.0
      %621 = vmatprep.subr.mxu0 0.0
      %622 = vmatpush2.msra.mxu0 0.0
      %623 = vmatprep.subr.mxu0 0.0
      %624 = vmatpush2.msra.mxu0 0.0
      %625 = vmatprep.subr.mxu0 0.0
      %626 = vmatpush2.msra.mxu0 0.0
      %627 = vmatprep.subr.mxu0 0.0
      %628 = vmatpush2.msra.mxu0 0.0
      %629 = vmatprep.subr.mxu0 0.0
      %630 = vmatpush2.msra.mxu0 0.0
      %631 = vmatprep.subr.mxu0 0.0
      %632 = vmatpush2.msra.mxu0 0.0
      %633 = vmatprep.subr.mxu0 0.0
      %634 = vmatpush2.msra.mxu0 0.0
      %635 = vmatprep.subr.mxu0 0.0
      %636 = vmatpush2.msra.mxu0 0.0
      %637 = vmatprep.subr.mxu0 0.0
      %638 = vmatpush2.msra.mxu0 0.0
      %639 = vmatprep.subr.mxu0 0.0
      %640 = vmatpush2.msra.mxu0 0.0
      %641 = vmatprep.subr.mxu0 0.0
      %642 = vmatpush2.msra.mxu0 0.0
      %643 = vmatprep.subr.mxu0 0.0
      %644 = vmatpush2.msra.mxu0 0.0
      %645 = vmatprep.subr.mxu0 0.0
      %646 = vmatpush2.msra.mxu0 0.0
      %647 = vmatprep.subr.mxu0 0.0
      %648 = vmatpush2.msra.mxu0 0.0
      %649 = vmatprep.subr.mxu0 0.0
      %650 = vmatpush2.msra.mxu0 0.0
      %651 = vmatprep.mubr.f32.mxu0 0.0
      %652 = vmatmul.mubr.f32.gmra.mxu0 %v585
      %v653 = vpop.f32.mrf.mxu0
      %v654 = vadd.f32 %v580, %v653
      %v655 = vpop.f32.mrf.mxu0
      %v656 = vadd.f32 %v582, %v655
      %657 = vdwg.mxu0
      %s658 = scalar_lea.vmem %s3, 4
      %v659 = vld [vmem:[%s658] sm:$0xf]
      %661 = vset.pattern.permute.xlu0 0
      %662 = vperm.xlu0 %661, %v659
      %v663 = vpop.permute.xlu0 %662
      %v665 = vadd.f32 %v654, %v663
      %v666 = vadd.f32 %v656, %v663
      %v667 = vmax.f32 %v665, 0.0
      %v668 = vmax.f32 %v666, 0.0
      %v671 = vcombine.low %v667, %v668
      %673 = vst [vmem:[%s322] sm:$0xff] %v671
      %s674 = smul.u32 2, %s22
      %p675 = scmp.lt.s32.totalorder %s21, 1
      %s676 = scalar_select %p675, %s21, 1
      %p677 = scmp.lt.s32.totalorder %s674, 1
      %s678 = scalar_select %p677, %s674, 1
      %s679 = smul.addr %s676, 2
      %s680 = sadd.s32 %s678, %s679
      %s681 = smul.addr %s680, 4
      %s682 = scalar_lea.vmem %s4, %s681
      %s683 = smul.u32 2, %s22
      %p684 = scmp.lt.s32.totalorder %s21, 1
      %s685 = scalar_select %p684, %s21, 1
      %p686 = scmp.lt.s32.totalorder %s683, 1
      %s687 = scalar_select %p686, %s683, 1
      %s688 = smul.addr %s685, 2
      %s689 = sadd.s32 %s687, %s688
      %s690 = smul.addr %s689, 4
      %s691 = scalar_lea.vmem %s5, %s690
      // Predicated region
      $region37: #{nddr_forward.1} parent=35 // pred_check
        %p692 = pneg %p147
      $region38: #{nddr_forward.1} parent=35 // pred_check_branch
        %694 = sbr.rel (%p692) target = $region40
      $region39: #{nddr_forward.1} parent=35 // pred_region
        %s695 = smul.u32 2, %s22
      $region40: #{nddr_forward.1} parent=35 // pred_fallthru
        _
      // Predicated region
      $region41: #{nddr_forward.1} parent=35 // pred_check
        %p696 = pneg %p175
      $region42: #{nddr_forward.1} parent=35 // pred_check_branch
        %698 = sbr.rel (%p696) target = $region44
      $region43: #{nddr_forward.1} parent=35 // pred_region
        %s699 = smul.u32 2, %s22
      $region44: #{nddr_forward.1} parent=35 // pred_fallthru
        _
    $region36: #{nddr_forward.1} parent=5 // pred_fallthru
      _
    %p700 = scmp.le.s32.totalorder 2, %s12
    // Predicated region
    $region45: #{nddr_forward.1} parent=5 // pred_check
      %p701 = pneg %p700
    $region46: #{nddr_forward.1} parent=5 // pred_check_branch
      %703 = sbr.rel (%p701) target = $region48
    $region47: #{nddr_forward.1} parent=5 // pred_region
      %s704 = ssub.s32 %s12, 2
      // Predicated region
      $region49: #{nddr_forward.1} parent=47 // pred_check
        %p705 = pneg %p153
      $region50: #{nddr_forward.1} parent=47 // pred_check_branch
        %707 = sbr.rel (%p705) target = $region52
      $region51: #{nddr_forward.1} parent=47 // pred_region
        %s708 = smul.u32 2, %s24
        %p709 = scmp.lt.s32.totalorder %s23, 1
        %s710 = scalar_select %p709, %s23, 1
        %p711 = scmp.lt.s32.totalorder %s708, 1
        %s712 = scalar_select %p711, %s708, 1
        %s713 = smul.addr %s710, 2
        %s714 = sadd.s32 %s712, %s713
        %s715 = smul.addr %s714, 4
        %s716 = scalar_lea.vmem %s4, %s715
      $region52: #{nddr_forward.1} parent=47 // pred_fallthru
        _
      // Predicated region
      $region53: #{nddr_forward.1} parent=47 // pred_check
        %p717 = pneg %p181
      $region54: #{nddr_forward.1} parent=47 // pred_check_branch
        %719 = sbr.rel (%p717) target = $region56
      $region55: #{nddr_forward.1} parent=47 // pred_region
        %s720 = smul.u32 2, %s24
        %p721 = scmp.lt.s32.totalorder %s23, 1
        %s722 = scalar_select %p721, %s23, 1
        %p723 = scmp.lt.s32.totalorder %s720, 1
        %s724 = scalar_select %p723, %s720, 1
        %s725 = smul.addr %s722, 2
        %s726 = sadd.s32 %s724, %s725
        %s727 = smul.addr %s726, 4
        %s728 = scalar_lea.vmem %s5, %s727
      $region56: #{nddr_forward.1} parent=47 // pred_fallthru
        _
    $region48: #{nddr_forward.1} parent=5 // pred_fallthru
      _
  $region6: #{nddr_forward.1} parent=0 // loop_footer
    %s16 = sadd.s32 1, %s12
  $region7: #{nddr_forward.1} parent=0 // loop_footer_branch
    %11 = sbr.rel target = $region3
  $region8: #{nddr_forward.1} parent=0 // loop_exit
    _

</llo_original>
